<compile_context>
chip_gen: v5e
topology: v5e:2x2
jax: 0.10.0
libtpu: 0.0.40
codegen_flags: <defaults>
</compile_context>

<pallas_src>
import functools

import jax
import jax.numpy as jnp
from jax import lax
from jax.experimental import pallas as pl
from jax.experimental.pallas import tpu as pltpu

_PAD_BIAS = 1e30  # |s|^2 slot for padded samples -> they can never win the argmin


def _nn_kernel(q_ref, s_ref, v_ref, o_ref, min_sc, acc_sc):
    """One (batch, q-tile, s-tile) grid step.

    q_ref:  (1, K, tq)   augmented queries  [q_0 .. q_{ndp-1}, 1]
    s_ref:  (1, K, ts)   augmented samples  [-2*s_0 .. -2*s_{ndp-1}, |s|^2]
    v_ref:  (1, ndv, ts) sample values (transposed, lane-dense)
    o_ref:  (1, ndv, tq) gathered values (transposed, lane-dense)
    min_sc: (1, tq)      running per-query biased min distance
    acc_sc: (ndv, tq)    running best values
    """
    si = pl.program_id(2)

    q = q_ref[0]                                      # (K, tq) f32
    s = s_ref[0]                                      # (K, ts) f32
    v = v_ref[0].astype(jnp.float32)                  # (ndv, ts)

    # d[s, q] = |s|^2 - 2 s.q  ==  ||q - s||^2 - |q|^2  (constant per query).
    # Single MXU push; no elementwise pass over the (ts, tq) tile.
    d = lax.dot_general(
        s, q,
        dimension_numbers=(((0,), (0,)), ((), ())),
        preferred_element_type=jnp.float32,
    )                                                 # (ts, tq)

    ts_blk = d.shape[0]
    tile_min = jnp.min(d, axis=0, keepdims=True)                      # (1, tq)
    iota = lax.broadcasted_iota(jnp.int32, d.shape, 0)                # (ts, tq)
    # First-occurrence argmin inside the tile (exact equality is safe: tile_min
    # is an element of the very same f32 array d).
    tile_idx = jnp.min(jnp.where(d == tile_min, iota, ts_blk),
                       axis=0, keepdims=True)                         # (1, tq)
    onehot = (iota == tile_idx).astype(jnp.float32)                   # (ts, tq)

    # Transposed gather: out^T = v^T @ onehot -> (ndv, tq), lane-dense along tq.
    tile_vals = jnp.dot(v, onehot, preferred_element_type=jnp.float32)

    @pl.when(si == 0)
    def _init():
        min_sc[...] = tile_min
        acc_sc[...] = tile_vals

    @pl.when(si > 0)
    def _update():
        better = tile_min < min_sc[...]   # strict '<': earliest tile wins ties
        min_sc[...] = jnp.where(better, tile_min, min_sc[...])
        acc_sc[...] = jnp.where(better, tile_vals, acc_sc[...])

    @pl.when(si == pl.num_programs(2) - 1)
    def _finalize():
        o_ref[0] = acc_sc[...].astype(o_ref.dtype)


def _pick_tile(n, target):
    """Return (tile, padded_n): full extent if small, else a 128-aligned tile."""
    if n <= target:
        return n, n
    t = max(128, (target // 128) * 128)
    n_pad = -(-n // t) * t
    return t, n_pad


@functools.partial(jax.jit, static_argnames=("tq_target", "ts_target"))
def nnnet_forward(sample_vals, sample_posns, query_posns, *,
                  tq_target=512, ts_target=512):
    """
    Args (PyTorch NNNet.forward convention):
        sample_vals:  (nS, B, ndv)
        sample_posns: (nS, B, ndp)
        query_posns:  (nQ, B, ndp)
    Returns:
        vals: (nQ, B, ndv)
    """
    nS, B, ndv = sample_vals.shape
    nQ = query_posns.shape[0]
    ndp = sample_posns.shape[-1]
    K = ndp + 1

    # ---- layout glue: batch-major, lane-dense (large axis last) -------------
    sp = jnp.transpose(sample_posns, (1, 2, 0)).astype(jnp.float32)   # (B, ndp, nS)
    qp = jnp.transpose(query_posns, (1, 2, 0)).astype(jnp.float32)    # (B, ndp, nQ)
    sv = jnp.transpose(sample_vals, (1, 2, 0))                        # (B, ndv, nS)

    # ---- fold -2 / |s|^2 into the distance matmul ----------------------------
    s2 = jnp.sum(sp * sp, axis=1, keepdims=True)                      # (B, 1, nS)
    s_aug = jnp.concatenate([-2.0 * sp, s2], axis=1)                  # (B, K, nS)
    q_aug = jnp.concatenate(
        [qp, jnp.ones((B, 1, nQ), jnp.float32)], axis=1)              # (B, K, nQ)

    # ---- tiling + padding -----------------------------------------------------
    tq, nQp = _pick_tile(nQ, tq_target)
    ts, nSp = _pick_tile(nS, ts_target)

    if nQp != nQ:
        q_aug = jnp.pad(q_aug, ((0, 0), (0, 0), (0, nQp - nQ)))
    if nSp != nS:
        pad = jnp.zeros((B, K, nSp - nS), jnp.float32).at[:, K - 1, :].set(_PAD_BIAS)
        s_aug = jnp.concatenate([s_aug, pad], axis=2)
        sv = jnp.pad(sv, ((0, 0), (0, 0), (0, nSp - nS)))

    grid = (B, nQp // tq, nSp // ts)

    flops = int(2 * B * nQp * nSp * (K + ndv))
    bytes_accessed = int((q_aug.size + s_aug.size) * 4
                         + sv.size * sv.dtype.itemsize
                         + B * ndv * nQp * sample_vals.dtype.itemsize)

    out_t = pl.pallas_call(
        _nn_kernel,
        out_shape=jax.ShapeDtypeStruct((B, ndv, nQp), sample_vals.dtype),
        grid_spec=pltpu.PrefetchScalarGridSpec(
            num_scalar_prefetch=0,
            grid=grid,
            in_specs=[
                pl.BlockSpec((1, K, tq), lambda b, qi, si: (b, 0, qi)),
                pl.BlockSpec((1, K, ts), lambda b, qi, si: (b, 0, si)),
                pl.BlockSpec((1, ndv, ts), lambda b, qi, si: (b, 0, si)),
            ],
            out_specs=pl.BlockSpec((1, ndv, tq), lambda b, qi, si: (b, 0, qi)),
            scratch_shapes=[
                pltpu.VMEM((1, tq), jnp.float32),    # running min distance
                pltpu.VMEM((ndv, tq), jnp.float32),  # running best values
            ],
        ),
        compiler_params=pltpu.CompilerParams(
            dimension_semantics=("parallel", "parallel", "arbitrary"),
            vmem_limit_bytes=32 * 1024 * 1024,
        ),
        cost_estimate=pl.CostEstimate(
            flops=flops, transcendentals=0, bytes_accessed=bytes_accessed),
    )(q_aug, s_aug, sv)                               # (B, ndv, nQp)

    out_t = out_t[:, :, :nQ]                          # drop query padding
    return jnp.transpose(out_t, (2, 0, 1))            # (nQ, B, ndv)


# ----------------------------- references / checks -----------------------------

def _reference(sample_vals, sample_posns, query_posns):
    """Pure-JAX 1-NN gather (direct squared distance, first-occurrence argmin)."""
    sv = jnp.transpose(sample_vals, (1, 0, 2))   # (B, nS, ndv)
    sp = jnp.transpose(sample_posns, (1, 0, 2))  # (B, nS, ndp)
    qp = jnp.transpose(query_posns, (1, 0, 2))   # (B, nQ, ndp)
    d = jnp.sum((qp[:, :, None, :] - sp[:, None, :, :]) ** 2, axis=-1)  # (B, nQ, nS)
    idx = jnp.argmin(d, axis=-1)                                        # (B, nQ)
    gathered = jnp.take_along_axis(sv, idx[..., None], axis=1)          # (B, nQ, ndv)
    return jnp.transpose(gathered, (1, 0, 2))


def _robust_ok(out, sample_vals, sample_posns, query_posns, tol=1e-4):
    """Tie-robust check: every output row equals the values of SOME sample whose
    distance to the query is within tol of the true minimum."""
    sv = jnp.transpose(sample_vals, (1, 0, 2))   # (B, nS, ndv)
    sp = jnp.transpose(sample_posns, (1, 0, 2))  # (B, nS, ndp)
    qp = jnp.transpose(query_posns, (1, 0, 2))   # (B, nQ, ndp)
    ob = jnp.transpose(out, (1, 0, 2))           # (B, nQ, ndv)
    d = jnp.sum((qp[:, :, None, :] - sp[:, None, :, :]) ** 2, axis=-1)   # (B, nQ, nS)
    near = d <= (jnp.min(d, axis=-1, keepdims=True) + tol)               # (B, nQ, nS)
    match = jnp.all(jnp.abs(ob[:, :, None, :] - sv[:, None, :, :]) <= 1e-5, axis=-1)
    return bool(jnp.all(jnp.any(near & match, axis=-1)))


# TODO(synk): NNNet.id_splat (scatter_add-based splat) is not part of forward()
# and is not implemented here.

if __name__ == "__main__":
    key = jax.random.PRNGKey(0)
    k1, k2, k3, k4, k5, k6 = jax.random.split(key, 6)

    # Case 1: small shapes consistent with the module (single tile per axis).
    nS, nQ, B, ndp, ndv = 16, 8, 2, 3, 4
    sample_vals = jax.random.normal(k1, (nS, B, ndv), dtype=jnp.float32)
    sample_posns = jax.random.normal(k2, (nS, B, ndp), dtype=jnp.float32)
    query_posns = jax.random.normal(k3, (nQ, B, ndp), dtype=jnp.float32)

    out = nnnet_forward(sample_vals, sample_posns, query_posns)
    out = jax.block_until_ready(out)
    assert out.shape == (nQ, B, ndv)
    ref = _reference(sample_vals, sample_posns, query_posns)
    assert jnp.allclose(out, ref, atol=1e-5), "small-case mismatch vs reference"

    # Case 2: larger ragged shapes exercising q/s tiling, streaming accumulation
    # across s-tiles, and the padded-sample path (grid = (2, 2, 3), 128-wide tiles).
    nS2, nQ2, B2 = 300, 200, 2
    sv2 = jax.random.normal(k4, (nS2, B2, ndv), dtype=jnp.float32)
    sp2 = jax.random.normal(k5, (nS2, B2, ndp), dtype=jnp.float32)
    qp2 = jax.random.normal(k6, (nQ2, B2, ndp), dtype=jnp.float32)

    out2 = nnnet_forward(sv2, sp2, qp2, tq_target=128, ts_target=128)
    out2 = jax.block_until_ready(out2)
    assert out2.shape == (nQ2, B2, ndv)
    assert _robust_ok(out2, sv2, sp2, qp2), "tiled-case mismatch vs reference"

    print("KERNEL_OK")
</pallas_src>

<mosaic_0001>
module attributes {stable_mosaic.version = 11 : i64} {
  func.func @_nn_kernel(%arg0: i32, %arg1: i32, %arg2: i32, %arg3: memref<1x4x8xf32, #tpu.memory_space<vmem>>, %arg4: memref<1x4x16xf32, #tpu.memory_space<vmem>>, %arg5: memref<1x4x16xf32, #tpu.memory_space<vmem>>, %arg6: memref<1x4x8xf32, #tpu.memory_space<vmem>>, %arg7: memref<1x8xf32, #tpu.memory_space<vmem>>, %arg8: memref<4x8xf32, #tpu.memory_space<vmem>>) attributes {dimension_semantics = [#tpu.dimension_semantics<parallel>, #tpu.dimension_semantics<parallel>, #tpu.dimension_semantics<arbitrary>], iteration_bounds = array<i64: 2, 1, 1>, scalar_prefetch = 0 : i64, scratch_operands = 2 : i64, tpu.core_type = #tpu.core_type<tc>, window_params = [{transform_indices = @transform_0, window_bounds = array<i64: 1, 4, 8>}, {transform_indices = @transform_1, window_bounds = array<i64: 1, 4, 16>}, {transform_indices = @transform_2, window_bounds = array<i64: 1, 4, 16>}, {transform_indices = @transform_3, window_bounds = array<i64: 1, 4, 8>}]} {
    %c0 = arith.constant 0 : index
    %c0_0 = arith.constant 0 : index
    %c0_1 = arith.constant 0 : index
    %0 = vector.load %arg3[%c0, %c0_0, %c0_1] : memref<1x4x8xf32, #tpu.memory_space<vmem>>, vector<1x4x8xf32>
    %1 = vector.shape_cast %0 : vector<1x4x8xf32> to vector<4x8xf32>
    %c0_2 = arith.constant 0 : index
    %c0_3 = arith.constant 0 : index
    %c0_4 = arith.constant 0 : index
    %2 = vector.load %arg4[%c0_2, %c0_3, %c0_4] : memref<1x4x16xf32, #tpu.memory_space<vmem>>, vector<1x4x16xf32>
    %3 = vector.shape_cast %2 : vector<1x4x16xf32> to vector<4x16xf32>
    %c0_5 = arith.constant 0 : index
    %c0_6 = arith.constant 0 : index
    %c0_7 = arith.constant 0 : index
    %4 = vector.load %arg5[%c0_5, %c0_6, %c0_7] : memref<1x4x16xf32, #tpu.memory_space<vmem>>, vector<1x4x16xf32>
    %5 = vector.shape_cast %4 : vector<1x4x16xf32> to vector<4x16xf32>
    %cst = arith.constant dense<0.000000e+00> : vector<16x8xf32>
    %6 = tpu.matmul %3, %1, %cst {dimension_numbers = #tpu.dot_dimension_numbers<[0], [0], [1], [1], [0, 1, 1, 1], [], []>} : vector<4x16xf32>, vector<4x8xf32>, vector<16x8xf32> -> vector<16x8xf32>
    %cst_8 = arith.constant dense<0x7F800000> : vector<8xf32>
    %7 = vector.multi_reduction <minimumf>, %6, %cst_8 [0] : vector<16x8xf32> to vector<8xf32>
    %8 = vector.shape_cast %7 : vector<8xf32> to vector<1x8xf32>
    %9 = tpu.iota {dimensions = array<i32: 0>} : vector<16x8xi32>
    %10 = vector.broadcast %8 : vector<1x8xf32> to vector<16x8xf32>
    %11 = arith.cmpf oeq, %6, %10 : vector<16x8xf32>
    %c16_i32 = arith.constant 16 : i32
    %12 = vector.broadcast %c16_i32 : i32 to vector<16x8xi32>
    %13 = arith.select %11, %9, %12 : vector<16x8xi1>, vector<16x8xi32>
    %cst_9 = arith.constant dense<2147483647> : vector<8xi32>
    %14 = vector.multi_reduction <minsi>, %13, %cst_9 [0] : vector<16x8xi32> to vector<8xi32>
    %15 = vector.shape_cast %14 : vector<8xi32> to vector<1x8xi32>
    %16 = vector.broadcast %15 : vector<1x8xi32> to vector<16x8xi32>
    %17 = arith.cmpi eq, %9, %16 : vector<16x8xi32>
    %18 = arith.extui %17 : vector<16x8xi1> to vector<16x8xi32>
    %19 = arith.sitofp %18 : vector<16x8xi32> to vector<16x8xf32>
    %cst_10 = arith.constant dense<0.000000e+00> : vector<4x8xf32>
    %20 = tpu.matmul %5, %19, %cst_10 {dimension_numbers = #tpu.dot_dimension_numbers<[1], [0], [0], [1], [0, 0, 1, 1], [], []>} : vector<4x16xf32>, vector<16x8xf32>, vector<4x8xf32> -> vector<4x8xf32>
    %c0_i32 = arith.constant 0 : i32
    %21 = arith.cmpi eq, %arg2, %c0_i32 : i32
    %22 = arith.extui %21 : i1 to i32
    %c0_i32_11 = arith.constant 0 : i32
    %23 = arith.cmpi ne, %22, %c0_i32_11 : i32
    scf.if %23 {
      %c0_16 = arith.constant 0 : index
      %c0_17 = arith.constant 0 : index
      %30 = vector.load %arg7[%c0_16, %c0_17] : memref<1x8xf32, #tpu.memory_space<vmem>>, vector<1x8xf32>
      tpu.vector_store %arg7[%c0_16, %c0_17], %8 {strides = array<i32>} : memref<1x8xf32, #tpu.memory_space<vmem>>, vector<1x8xf32>,
      %c0_18 = arith.constant 0 : index
      %c0_19 = arith.constant 0 : index
      %31 = vector.load %arg8[%c0_18, %c0_19] : memref<4x8xf32, #tpu.memory_space<vmem>>, vector<4x8xf32>
      tpu.vector_store %arg8[%c0_18, %c0_19], %20 {strides = array<i32>} : memref<4x8xf32, #tpu.memory_space<vmem>>, vector<4x8xf32>,
    } else {
    }
    %c0_i32_12 = arith.constant 0 : i32
    %24 = arith.cmpi sgt, %arg2, %c0_i32_12 : i32
    %25 = arith.extui %24 : i1 to i32
    %c0_i32_13 = arith.constant 0 : i32
    %26 = arith.cmpi ne, %25, %c0_i32_13 : i32
    scf.if %26 {
      %c0_16 = arith.constant 0 : index
      %c0_17 = arith.constant 0 : index
      %30 = vector.load %arg7[%c0_16, %c0_17] : memref<1x8xf32, #tpu.memory_space<vmem>>, vector<1x8xf32>
      %31 = arith.cmpf olt, %8, %30 : vector<1x8xf32>
      %c0_18 = arith.constant 0 : index
      %c0_19 = arith.constant 0 : index
      %32 = vector.load %arg7[%c0_18, %c0_19] : memref<1x8xf32, #tpu.memory_space<vmem>>, vector<1x8xf32>
      %33 = arith.select %31, %8, %32 : vector<1x8xi1>, vector<1x8xf32>
      %c0_20 = arith.constant 0 : index
      %c0_21 = arith.constant 0 : index
      %34 = vector.load %arg7[%c0_20, %c0_21] : memref<1x8xf32, #tpu.memory_space<vmem>>, vector<1x8xf32>
      tpu.vector_store %arg7[%c0_20, %c0_21], %33 {strides = array<i32>} : memref<1x8xf32, #tpu.memory_space<vmem>>, vector<1x8xf32>,
      %c0_22 = arith.constant 0 : index
      %c0_23 = arith.constant 0 : index
      %35 = vector.load %arg8[%c0_22, %c0_23] : memref<4x8xf32, #tpu.memory_space<vmem>>, vector<4x8xf32>
      %36 = vector.shape_cast %31 : vector<1x8xi1> to vector<1x8xi1>
      %37 = vector.broadcast %36 : vector<1x8xi1> to vector<4x8xi1>
      %38 = arith.select %37, %20, %35 : vector<4x8xi1>, vector<4x8xf32>
      %c0_24 = arith.constant 0 : index
      %c0_25 = arith.constant 0 : index
      %39 = vector.load %arg8[%c0_24, %c0_25] : memref<4x8xf32, #tpu.memory_space<vmem>>, vector<4x8xf32>
      tpu.vector_store %arg8[%c0_24, %c0_25], %38 {strides = array<i32>} : memref<4x8xf32, #tpu.memory_space<vmem>>, vector<4x8xf32>,
    } else {
    }
    %c0_i32_14 = arith.constant 0 : i32
    %27 = arith.cmpi eq, %arg2, %c0_i32_14 : i32
    %28 = arith.extui %27 : i1 to i32
    %c0_i32_15 = arith.constant 0 : i32
    %29 = arith.cmpi ne, %28, %c0_i32_15 : i32
    scf.if %29 {
      %c0_16 = arith.constant 0 : index
      %c0_17 = arith.constant 0 : index
      %30 = vector.load %arg8[%c0_16, %c0_17] : memref<4x8xf32, #tpu.memory_space<vmem>>, vector<4x8xf32>
      %c0_18 = arith.constant 0 : index
      %c0_19 = arith.constant 0 : index
      %c0_20 = arith.constant 0 : index
      %31 = vector.load %arg6[%c0_18, %c0_19, %c0_20] : memref<1x4x8xf32, #tpu.memory_space<vmem>>, vector<1x4x8xf32>
      %32 = vector.shape_cast %31 : vector<1x4x8xf32> to vector<4x8xf32>
      %33 = vector.shape_cast %30 : vector<4x8xf32> to vector<1x4x8xf32>
      tpu.vector_store %arg6[%c0_18, %c0_19, %c0_20], %33 {strides = array<i32>} : memref<1x4x8xf32, #tpu.memory_space<vmem>>, vector<1x4x8xf32>,
    } else {
    }
    return
  }
  func.func @transform_0(%arg0: i32, %arg1: i32, %arg2: i32) -> (i32, i32, i32) {
    %c0_i32 = arith.constant 0 : i32
    %c0_i32_0 = arith.constant 0 : i32
    return %arg0, %c0_i32, %arg1 : i32, i32, i32
  }
  func.func @transform_1(%arg0: i32, %arg1: i32, %arg2: i32) -> (i32, i32, i32) {
    %c0_i32 = arith.constant 0 : i32
    %c0_i32_0 = arith.constant 0 : i32
    return %arg0, %c0_i32, %arg2 : i32, i32, i32
  }
  func.func @transform_2(%arg0: i32, %arg1: i32, %arg2: i32) -> (i32, i32, i32) {
    %c0_i32 = arith.constant 0 : i32
    %c0_i32_0 = arith.constant 0 : i32
    return %arg0, %c0_i32, %arg2 : i32, i32, i32
  }
  func.func @transform_3(%arg0: i32, %arg1: i32, %arg2: i32) -> (i32, i32, i32) {
    %c0_i32 = arith.constant 0 : i32
    %c0_i32_0 = arith.constant 0 : i32
    return %arg0, %c0_i32, %arg1 : i32, i32, i32
  }
}

</mosaic_0001>

<llo_original>
// kernel: nnnet_forward.1
$region0: #{nnnet_forward.1}
  #allocation0 [shape = 'u32[]', space=smem, size = 0x4, offset = 0x4, fixed_abs, tag = 'smem constant byte address 0x4 - core index']
  #allocation1 [shape = 'u32[72,128]{1,0:T(1,128)}', space=vmem, size = 0x9000, scoped, tag = 'internal scratch']
  #allocation2 [shape = 'f32[1,8]{1,0:T(1,128)}', space=vmem, size = 0x200, scoped, tag = 'scratch operand']
  #allocation3 [shape = 'f32[4,8]{1,0:T(4,128)}', space=vmem, size = 0x800, scoped, tag = 'scratch operand']
  %s0 = inlined_call_operand.vmem [shape: f32[2,4,8], index: 0, kind: input, shape index: {}]
  %s1 = inlined_call_operand.vmem [shape: f32[2,4,16], index: 1, kind: input, shape index: {}]
  %s2 = inlined_call_operand.vmem [shape: f32[2,4,16], index: 2, kind: input, shape index: {}]
  %s3 = inlined_call_operand.hbm [shape: f32[2,4,8], index: 3, kind: output, shape index: {}]
  %s4 = sld [smem:[#allocation0]]
  $region57: #{nnnet_forward.1} parent=0
    _
  %s6 = ssub.s32 1, %s4
  %s7 = scalar_select 0, %s6, %s4
  $region1: #{nnnet_forward.1} parent=0
    #allocation4 [shape = 'u8[4096]{0}', space=vmem, size = 0x1000, scoped, tag = 'output window, operand 0']
    #allocation5 [shape = 's32[2]{0}', space=sflag, size = 0x8, scoped, tag = 'scoped memory for nnnet_forward.1']
    %8 = vsyncpa [#allocation5], 0
    %s9 = scalar_lea.sflag [#allocation5], 1
    %10 = vsyncpa %s9, 0
    loop: start=0, step=1, limit=4
    $region2: #{nnnet_forward.1} parent=1 // loop_pre_header
      _
    $region3: #{nnnet_forward.1} parent=1 // loop_header
      %s12 = sphi 0, %s16
      %p13 = scmp.ge.s32.totalorder %s12, 4
      %s19 = sphi 0, %s38
      %s20 = sphi 0, %s34
      %s21 = sphi 0, %s30
      %s22 = sphi 0, %s19
      %s23 = sphi 0, %s20
      %s24 = sphi 0, %s21
      %s25 = sphi 0, %s22
      %s26 = sphi 0, %s23
      %s27 = sphi 0, %s24
      %s43 = sphi 0, %s45
      %s46 = sphi 0, %s43
      %s47 = sphi 0, %s46
      %s63 = sphi 0, %s47
      %s71 = sphi 0, %s73
      %s74 = sphi 0, %s71
      %s75 = sphi 0, %s74
      %s91 = sphi 0, %s75
      %s99 = sphi 0, %s101
      %s102 = sphi 0, %s99
      %s103 = sphi 0, %s102
      %s119 = sphi 0, %s103
      %s127 = sphi 0, %s129
      %s130 = sphi 0, %s127
      %s131 = sphi 0, %s130
      %s147 = sphi 0, %s131
    $region4: #{nnnet_forward.1} parent=1 // loop_header_branch
      %15 = sbr.rel (%p13) target = $region8
    $region5: #{nnnet_forward.1} parent=1 // loop_body
      %s17 = ssub.s32 %s12, 1
      %s18 = ssub.s32 %s12, 2
      %s28 = sadd.s32 1, %s21
      %p29 = scmp.ge.s32.totalorder %s28, 1
      %s30 = scalar_select %p29, 0, %s28
      %s31 = sadd.s32 1, %s20
      %s32 = scalar_select %p29, %s31, %s20
      %p33 = scmp.ge.s32.totalorder %s32, 1
      %s34 = scalar_select %p33, 0, %s32
      %s35 = sadd.s32 1, %s19
      %s36 = scalar_select %p33, %s35, %s19
      %p37 = scmp.ge.s32.totalorder %s36, 2
      %s38 = scalar_select %p37, 0, %s36
      %s39 = ssub.s32 %s19, %s38
      %s40 = ssub.s32 %s20, %s34
      %s41 = sor.u32 %s39, %s40
      %p42 = scmp.eq.s32.totalorder %s41, 0
      %s44 = sadd.s32 %s43, 1
      %s45 = scalar_select %p42, %s43, %s44
      %p48 = pneg %p42
      %p49 = scmp.eq.s32.totalorder %s12, 1
      %p50 = por %p48, %p49
      %p51 = scmp.ne.s32.totalorder %s43, %s46
      %p52 = scmp.eq.s32.totalorder %s12, 0
      %p53 = por %p51, %p52
      %p54 = scmp.ne.s32.totalorder %s43, %s46
      %p55 = scmp.eq.s32.totalorder %s17, 1
      %p56 = por %p54, %p55
      %p57 = scmp.ne.s32.totalorder %s46, %s47
      %p58 = scmp.eq.s32.totalorder %s17, 0
      %p59 = por %p57, %p58
      %p60 = scmp.ne.s32.totalorder %s46, %s47
      %p61 = scmp.eq.s32.totalorder %s18, 1
      %p62 = por %p60, %p61
      %p64 = scmp.ne.s32.totalorder %s47, %s63
      %p65 = scmp.eq.s32.totalorder %s18, 0
      %p66 = por %p64, %p65
      %s67 = ssub.s32 %s19, %s38
      %s68 = ssub.s32 %s21, %s30
      %s69 = sor.u32 %s67, %s68
      %p70 = scmp.eq.s32.totalorder %s69, 0
      %s72 = sadd.s32 %s71, 1
      %s73 = scalar_select %p70, %s71, %s72
      %p76 = pneg %p70
      %p77 = scmp.eq.s32.totalorder %s12, 1
      %p78 = por %p76, %p77
      %p79 = scmp.ne.s32.totalorder %s71, %s74
      %p80 = scmp.eq.s32.totalorder %s12, 0
      %p81 = por %p79, %p80
      %p82 = scmp.ne.s32.totalorder %s71, %s74
      %p83 = scmp.eq.s32.totalorder %s17, 1
      %p84 = por %p82, %p83
      %p85 = scmp.ne.s32.totalorder %s74, %s75
      %p86 = scmp.eq.s32.totalorder %s17, 0
      %p87 = por %p85, %p86
      %p88 = scmp.ne.s32.totalorder %s74, %s75
      %p89 = scmp.eq.s32.totalorder %s18, 1
      %p90 = por %p88, %p89
      %p92 = scmp.ne.s32.totalorder %s75, %s91
      %p93 = scmp.eq.s32.totalorder %s18, 0
      %p94 = por %p92, %p93
      %s95 = ssub.s32 %s19, %s38
      %s96 = ssub.s32 %s21, %s30
      %s97 = sor.u32 %s95, %s96
      %p98 = scmp.eq.s32.totalorder %s97, 0
      %s100 = sadd.s32 %s99, 1
      %s101 = scalar_select %p98, %s99, %s100
      %p104 = pneg %p98
      %p105 = scmp.eq.s32.totalorder %s12, 1
      %p106 = por %p104, %p105
      %p107 = scmp.ne.s32.totalorder %s99, %s102
      %p108 = scmp.eq.s32.totalorder %s12, 0
      %p109 = por %p107, %p108
      %p110 = scmp.ne.s32.totalorder %s99, %s102
      %p111 = scmp.eq.s32.totalorder %s17, 1
      %p112 = por %p110, %p111
      %p113 = scmp.ne.s32.totalorder %s102, %s103
      %p114 = scmp.eq.s32.totalorder %s17, 0
      %p115 = por %p113, %p114
      %p116 = scmp.ne.s32.totalorder %s102, %s103
      %p117 = scmp.eq.s32.totalorder %s18, 1
      %p118 = por %p116, %p117
      %p120 = scmp.ne.s32.totalorder %s103, %s119
      %p121 = scmp.eq.s32.totalorder %s18, 0
      %p122 = por %p120, %p121
      %s123 = ssub.s32 %s19, %s38
      %s124 = ssub.s32 %s20, %s34
      %s125 = sor.u32 %s123, %s124
      %p126 = scmp.eq.s32.totalorder %s125, 0
      %s128 = sadd.s32 %s127, 1
      %s129 = scalar_select %p126, %s127, %s128
      %p132 = pneg %p126
      %p133 = scmp.eq.s32.totalorder %s12, 1
      %p134 = por %p132, %p133
      %p135 = scmp.ne.s32.totalorder %s127, %s130
      %p136 = scmp.eq.s32.totalorder %s12, 0
      %p137 = por %p135, %p136
      %p138 = scmp.ne.s32.totalorder %s127, %s130
      %p139 = scmp.eq.s32.totalorder %s17, 1
      %p140 = por %p138, %p139
      %p141 = scmp.ne.s32.totalorder %s130, %s131
      %p142 = scmp.eq.s32.totalorder %s17, 0
      %p143 = por %p141, %p142
      %p144 = scmp.ne.s32.totalorder %s130, %s131
      %p145 = scmp.eq.s32.totalorder %s18, 1
      %p146 = por %p144, %p145
      %p148 = scmp.ne.s32.totalorder %s131, %s147
      %p149 = scmp.eq.s32.totalorder %s18, 0
      %p150 = por %p148, %p149
      %p151 = scmp.le.s32.totalorder 1, %s12
      %p152 = scmp.lt.s32.totalorder %s12, 3
      %p153 = pnand %p151, %p152
      %p154 = pneg %p153
      // Predicated region
      $region9: #{nnnet_forward.1} parent=5 // pred_check
        _
      $region10: #{nnnet_forward.1} parent=5 // pred_check_branch
        %156 = sbr.rel (%p153) target = $region12
      $region11: #{nnnet_forward.1} parent=5 // pred_region
        %s157 = ssub.s32 %s12, 1
      $region12: #{nnnet_forward.1} parent=5 // pred_fallthru
        _
      %p158 = scmp.lt.s32.totalorder %s12, 2
      // Predicated region
      $region13: #{nnnet_forward.1} parent=5 // pred_check
        %p159 = pneg %p158
      $region14: #{nnnet_forward.1} parent=5 // pred_check_branch
        %161 = sbr.rel (%p159) target = $region16
      $region15: #{nnnet_forward.1} parent=5 // pred_region
        // Predicated region
        $region17: #{nnnet_forward.1} parent=15 // pred_check
          %p162 = pneg %p53
        $region18: #{nnnet_forward.1} parent=15 // pred_check_branch
          %164 = sbr.rel (%p162) target = $region20
        $region19: #{nnnet_forward.1} parent=15 // pred_region
          %p165 = scmp.lt.s32.totalorder %s19, 1
          %s166 = scalar_select %p165, %s19, 1
          %p167 = scmp.lt.s32.totalorder %s20, 0
          %s168 = scalar_select %p167, %s20, 0
          %s169 = sadd.s32 %s168, %s166
          %s170 = smul.addr %s169, 4
          %s171 = scalar_lea.vmem %s0, %s170
        $region20: #{nnnet_forward.1} parent=15 // pred_fallthru
          _
        // Predicated region
        $region21: #{nnnet_forward.1} parent=15 // pred_check
          %p172 = pneg %p81
        $region22: #{nnnet_forward.1} parent=15 // pred_check_branch
          %174 = sbr.rel (%p172) target = $region24
        $region23: #{nnnet_forward.1} parent=15 // pred_region
          %p175 = scmp.lt.s32.totalorder %s19, 1
          %s176 = scalar_select %p175, %s19, 1
          %p177 = scmp.lt.s32.totalorder %s21, 0
          %s178 = scalar_select %p177, %s21, 0
          %s179 = sadd.s32 %s178, %s176
          %s180 = smul.addr %s179, 4
          %s181 = scalar_lea.vmem %s1, %s180
        $region24: #{nnnet_forward.1} parent=15 // pred_fallthru
          _
        // Predicated region
        $region25: #{nnnet_forward.1} parent=15 // pred_check
          %p182 = pneg %p109
        $region26: #{nnnet_forward.1} parent=15 // pred_check_branch
          %184 = sbr.rel (%p182) target = $region28
        $region27: #{nnnet_forward.1} parent=15 // pred_region
          %p185 = scmp.lt.s32.totalorder %s19, 1
          %s186 = scalar_select %p185, %s19, 1
          %p187 = scmp.lt.s32.totalorder %s21, 0
          %s188 = scalar_select %p187, %s21, 0
          %s189 = sadd.s32 %s188, %s186
          %s190 = smul.addr %s189, 4
          %s191 = scalar_lea.vmem %s2, %s190
        $region28: #{nnnet_forward.1} parent=15 // pred_fallthru
          _
      $region16: #{nnnet_forward.1} parent=5 // pred_fallthru
        _
      %p192 = scmp.le.s32.totalorder 1, %s12
      %p193 = scmp.lt.s32.totalorder %s12, 3
      %p194 = pnand %p192, %p193
      %p195 = pneg %p194
      // Predicated region
      $region29: #{nnnet_forward.1} parent=5 // pred_check
        _
      $region30: #{nnnet_forward.1} parent=5 // pred_check_branch
        %197 = sbr.rel (%p194) target = $region32
      $region31: #{nnnet_forward.1} parent=5 // pred_region
        %s198 = ssub.s32 %s12, 1
        %p199 = scmp.lt.s32.totalorder %s22, 1
        %s200 = scalar_select %p199, %s22, 1
        %p201 = scmp.lt.s32.totalorder %s23, 0
        %s202 = scalar_select %p201, %s23, 0
        %s203 = sadd.s32 %s202, %s200
        %s204 = smul.addr %s203, 4
        %s205 = scalar_lea.vmem %s0, %s204
        %p206 = pneg %p59
        %p207 = pneg %p56
        %p208 = scmp.lt.s32.totalorder %s22, 1
        %s209 = scalar_select %p208, %s22, 1
        %p210 = scmp.lt.s32.totalorder %s24, 0
        %s211 = scalar_select %p210, %s24, 0
        %s212 = sadd.s32 %s211, %s209
        %s213 = smul.addr %s212, 4
        %s214 = scalar_lea.vmem %s1, %s213
        %p215 = pneg %p87
        %p216 = pneg %p84
        %p217 = scmp.lt.s32.totalorder %s22, 1
        %s218 = scalar_select %p217, %s22, 1
        %p219 = scmp.lt.s32.totalorder %s24, 0
        %s220 = scalar_select %p219, %s24, 0
        %s221 = sadd.s32 %s220, %s218
        %s222 = smul.addr %s221, 4
        %s223 = scalar_lea.vmem %s2, %s222
        %p224 = pneg %p115
        %p225 = pneg %p112
        %p226 = pneg %p143
        %p227 = pneg %p140
        %s228 = sand.u32 %s130, 1
        %s229 = scalar_lea.sflag [#allocation5], %s228
        %s230 = sand.u32 %s130, 1
        %s231 = smul.addr %s230, 4
        %s232 = scalar_lea.vmem [#allocation4], %s231
        %p233 = scmp.lt.s32.totalorder %s22, 1
        %s234 = scalar_select %p233, %s22, 1
        %p235 = scmp.lt.s32.totalorder %s23, 0
        %s236 = scalar_select %p235, %s23, 0
        %s237 = sadd.s32 %s236, %s234
        %s238 = smul.addr %s237, 4
        %s239 = scalar_lea.vmem %s0, %s238
        %p240 = scmp.lt.s32.totalorder %s22, 1
        %s241 = scalar_select %p240, %s22, 1
        %p242 = scmp.lt.s32.totalorder %s24, 0
        %s243 = scalar_select %p242, %s24, 0
        %s244 = sadd.s32 %s243, %s241
        %s245 = smul.addr %s244, 4
        %s246 = scalar_lea.vmem %s1, %s245
        %p247 = scmp.lt.s32.totalorder %s22, 1
        %s248 = scalar_select %p247, %s22, 1
        %p249 = scmp.lt.s32.totalorder %s24, 0
        %s250 = scalar_select %p249, %s24, 0
        %s251 = sadd.s32 %s250, %s248
        %s252 = smul.addr %s251, 4
        %s253 = scalar_lea.vmem %s2, %s252
        %v254 = vld [vmem:[%s239] sm:$0xf]
        %v255 = vld [vmem:[%s246] sm:$0xf]
        %v256 = vld [vmem:[%s253] sm:$0xf]
        %257 = vxpose.xlu0.b32.start [1/16] %v255, 128
        %258 = vxpose.xlu0.b32.cont [2/16] 0.0, 128
        %259 = vxpose.xlu0.b32.cont [3/16] 0.0, 128
        %260 = vxpose.xlu0.b32.cont [4/16] 0.0, 128
        %261 = vxpose.xlu0.b32.cont [5/16] 0.0, 128
        %262 = vxpose.xlu0.b32.cont [6/16] 0.0, 128
        %263 = vxpose.xlu0.b32.cont [7/16] 0.0, 128
        %264 = vxpose.xlu0.b32.cont [8/16] 0.0, 128
        %265 = vxpose.xlu0.b32.cont [9/16] 0.0, 128
        %266 = vxpose.xlu0.b32.cont [10/16] 0.0, 128
        %267 = vxpose.xlu0.b32.cont [11/16] 0.0, 128
        %268 = vxpose.xlu0.b32.cont [12/16] 0.0, 128
        %269 = vxpose.xlu0.b32.cont [13/16] 0.0, 128
        %270 = vxpose.xlu0.b32.cont [14/16] 0.0, 128
        %271 = vxpose.xlu0.b32.cont [15/16] 0.0, 128
        %272 = vxpose.xlu0.b32.end [16/16] 0.0, 128
        %v273 = vpop.trf.xlu0
        %v274 = vpop.trf.xlu0
        %v275 = vpop.trf.xlu0
        %v276 = vpop.trf.xlu0
        %v277 = vpop.trf.xlu0
        %v278 = vpop.trf.xlu0
        %v279 = vpop.trf.xlu0
        %v280 = vpop.trf.xlu0
        %v281 = vpop.trf.xlu0
        %v282 = vpop.trf.xlu0
        %v283 = vpop.trf.xlu0
        %v284 = vpop.trf.xlu0
        %v285 = vpop.trf.xlu0
        %v286 = vpop.trf.xlu0
        %v287 = vpop.trf.xlu0
        %v288 = vpop.trf.xlu0
        %vm289 = vcmask 31744
        %v291 = vsel %vm289, %v273, 0
        %v294 = vsel %vm289, %v274, 0
        %vm296 = vcmask 1043456
        %v298 = vsel %vm296, %v254, 0
        %300 = vmatpush.msra.mxu0 0.0
        %301 = vmatpush.msra.mxu0 0.0
        %302 = vmatpush.msra.mxu0 0.0
        %303 = vmatpush.msra.mxu0 0.0
        %304 = vmatpush.msra.mxu0 0.0
        %305 = vmatpush.msra.mxu0 0.0
        %306 = vmatpush.msra.mxu0 0.0
        %307 = vmatpush.msra.mxu0 0.0
        %308 = vmatpush.msra.mxu0 0.0
        %309 = vmatpush.msra.mxu0 0.0
        %310 = vmatpush.msra.mxu0 0.0
        %311 = vmatpush.msra.mxu0 0.0
        %312 = vmatpush.msra.mxu0 0.0
        %313 = vmatpush.msra.mxu0 0.0
        %314 = vmatpush.msra.mxu0 0.0
        %315 = vmatpush.msra.mxu0 %v298
        %316 = vmatmul.f32.gmra.mxu0 %v291
        %v317 = vpop.f32.mrf.mxu0
        %v318 = vadd.f32 0.0, %v317
        %319 = vmatmul.f32.gmra.mxu0 %v294
        %v320 = vpop.f32.mrf.mxu0
        %v321 = vadd.f32 0.0, %v320
        %322 = vdwg.mxu0
        %vm323 = vcmask 64512
        %v324 = vsel %vm323, %v318, inf
        %v325 = vsel %vm323, %v321, inf
        %v326 = vmin.f32 %v324, %v325
        %v327 = vrot.slane %v326, 4
        %v328 = vmin.f32 %v326, %v327
        %v329 = vrot.slane %v328, 2
        %v330 = vmin.f32 %v328, %v329
        %v331 = vrot.slane %v330, 1
        %v332 = vmin.f32 %v330, %v331
        %v333 = vlaneseq
        %v334 = vshrl.u32 %v333, 7
        %v335 = vadd.s32 %v334, 8
        %vm336 = vcmp.eq.f32.partialorder %v318, %v332
        %vm337 = vcmp.eq.f32.partialorder %v321, %v332
        %v338 = vsel %vm336, %v334, 16
        %v339 = vsel %vm337, %v335, 16
        %v340 = vsel %vm323, %v338, 2147483647
        %v341 = vsel %vm323, %v339, 2147483647
        %vm342 = vcmp.lt.s32.totalorder %v340, %v341
        %v343 = vsel %vm342, %v340, %v341
        %v344 = vrot.slane %v343, 4
        %vm345 = vcmp.lt.s32.totalorder %v343, %v344
        %v346 = vsel %vm345, %v343, %v344
        %v347 = vrot.slane %v346, 2
        %vm348 = vcmp.lt.s32.totalorder %v346, %v347
        %v349 = vsel %vm348, %v346, %v347
        %v350 = vrot.slane %v349, 1
        %vm351 = vcmp.lt.s32.totalorder %v349, %v350
        %v352 = vsel %vm351, %v349, %v350
        %vm353 = vcmp.eq.s32.totalorder %v334, %v352
        %vm354 = vcmp.eq.s32.totalorder %v335, %v352
        %v355 = vsel %vm353, 1, 0
        %v356 = vsel %vm354, 1, 0
        %v357 = vcvt.s32.f32 %v355
        %v358 = vcvt.s32.f32 %v356
        %vm359 = vcmask 130048
        %v361 = vsel %vm359, %v256, 0
        %363 = vmatpush.msra.mxu0 0.0
        %364 = vmatpush.msra.mxu0 0.0
        %365 = vmatpush.msra.mxu0 0.0
        %366 = vmatpush.msra.mxu0 0.0
        %367 = vmatpush.msra.mxu0 0.0
        %368 = vmatpush.msra.mxu0 0.0
        %369 = vmatpush.msra.mxu0 0.0
        %370 = vmatpush.msra.mxu0 0.0
        %371 = vmatpush.msra.mxu0 0.0
        %372 = vmatpush.msra.mxu0 0.0
        %373 = vmatpush.msra.mxu0 0.0
        %374 = vmatpush.msra.mxu0 0.0
        %375 = vmatpush.msra.mxu0 0.0
        %376 = vmatpush.msra.mxu0 0.0
        %377 = vmatpush.msra.mxu0 %v358
        %378 = vmatpush.msra.mxu0 %v357
        %379 = vmatmul.f32.gmra.mxu0 %v361
        %v380 = vpop.f32.mrf.mxu0
        %v381 = vadd.f32 0.0, %v380
        %382 = vdwg.mxu0
        %p383 = scmp.eq.s32.totalorder %s24, 0
        // Predicated region
        $region33: #{nnnet_forward.1} parent=31 // pred_check
          %p384 = pneg %p383
        $region34: #{nnnet_forward.1} parent=31 // pred_check_branch
          %386 = sbr.rel (%p384) target = $region36
        $region35: #{nnnet_forward.1} parent=31 // pred_region
          %vm387 = vcmask 57344
          %388 = vst.msk [vmem:[#allocation2] sm:$0x1] %vm387, %v332
          %vm389 = vcmask 60416
          %390 = vst.msk [vmem:[#allocation3] sm:$0xf] %vm389, %v381
        $region36: #{nnnet_forward.1} parent=31 // pred_fallthru
          _
        %p391 = scmp.gt.s32.totalorder %s24, 0
        // Predicated region
        $region37: #{nnnet_forward.1} parent=31 // pred_check
          %p392 = pneg %p391
        $region38: #{nnnet_forward.1} parent=31 // pred_check_branch
          %394 = sbr.rel (%p392) target = $region40
        $region39: #{nnnet_forward.1} parent=31 // pred_region
          %v395 = vld [vmem:[#allocation2] sm:$0x1]
          %vm396 = vcmp.lt.f32.partialorder %v332, %v395
          %v397 = vsel %vm396, %v332, %v395
          %vm398 = vcmask 57344
          %399 = vst.msk [vmem:[#allocation2] sm:$0x1] %vm398, %v397
          %v400 = vld [vmem:[#allocation3] sm:$0xf]
          %v401 = vsel %vm396, 1, 0
          %v402 = vperm.slane %v401, 0
          %vm403 = vcmp.eq.s32.totalorder %v402, 1
          %v404 = vsel %vm403, %v381, %v400
          %vm405 = vcmask 60416
          %406 = vst.msk [vmem:[#allocation3] sm:$0xf] %vm405, %v404
        $region40: #{nnnet_forward.1} parent=31 // pred_fallthru
          _
        // Predicated region
        $region41: #{nnnet_forward.1} parent=31 // pred_check
          %p407 = pneg %p383
        $region42: #{nnnet_forward.1} parent=31 // pred_check_branch
          %409 = sbr.rel (%p407) target = $region44
        $region43: #{nnnet_forward.1} parent=31 // pred_region
          %v410 = vld [vmem:[#allocation3] sm:$0xf]
          %vm411 = vcmask 60416
          %412 = vst.msk [vmem:[%s232] sm:$0xf] %vm411, %v410
        $region44: #{nnnet_forward.1} parent=31 // pred_fallthru
          _
        %s413 = sand.u32 %s130, 1
        %s414 = scalar_lea.sflag [#allocation5], %s413
        %s415 = sand.u32 %s130, 1
        %s416 = smul.addr %s415, 4
        %s417 = scalar_lea.vmem [#allocation4], %s416
        // Predicated region
        $region45: #{nnnet_forward.1} parent=31 // pred_check
          %p418 = pneg %p140
        $region46: #{nnnet_forward.1} parent=31 // pred_check_branch
          %420 = sbr.rel (%p418) target = $region48
        $region47: #{nnnet_forward.1} parent=31 // pred_region
          %422 = vsyncadd %s414, 0
          %s423 = sadd.s32 %s23, %s22
          %s424 = smul.addr %s423, 4
          %s425 = scalar_lea.hbm %s3, %s424
          %s427 = sshll.u32 %s417, 4
          %s428 = int_to_ptr.vmem [resolvable:$true] %s427
          %s429 = sshll.u32 %s425, 4
          %s430 = int_to_ptr.hbm [resolvable:$true] %s429
          %432 = dma.vmem_to_hbm [thread:$0]  %s428, 64, %s430, %s414
        $region48: #{nnnet_forward.1} parent=31 // pred_fallthru
          _
      $region32: #{nnnet_forward.1} parent=5 // pred_fallthru
        _
      %p433 = scmp.le.s32.totalorder 2, %s12
      // Predicated region
      $region49: #{nnnet_forward.1} parent=5 // pred_check
        %p434 = pneg %p433
      $region50: #{nnnet_forward.1} parent=5 // pred_check_branch
        %436 = sbr.rel (%p434) target = $region52
      $region51: #{nnnet_forward.1} parent=5 // pred_region
        %s437 = ssub.s32 %s12, 2
        // Predicated region
        $region53: #{nnnet_forward.1} parent=51 // pred_check
          %p438 = pneg %p146
        $region54: #{nnnet_forward.1} parent=51 // pred_check_branch
          %440 = sbr.rel (%p438) target = $region56
        $region55: #{nnnet_forward.1} parent=51 // pred_region
          %s441 = sand.u32 %s131, 1
          %s442 = scalar_lea.sflag [#allocation5], %s441
          %s443 = sand.u32 %s131, 1
          %s444 = smul.addr %s443, 4
          %s445 = scalar_lea.vmem [#allocation4], %s444
          %447 = dma.done %s442, 64
        $region56: #{nnnet_forward.1} parent=51 // pred_fallthru
          _
      $region52: #{nnnet_forward.1} parent=5 // pred_fallthru
        _
    $region6: #{nnnet_forward.1} parent=1 // loop_footer
      %s16 = sadd.s32 1, %s12
    $region7: #{nnnet_forward.1} parent=1 // loop_footer_branch
      %11 = sbr.rel target = $region3
    $region8: #{nnnet_forward.1} parent=1 // loop_exit
      _
    %448 = vsyncpa [#allocation5], 1
    %s449 = scalar_lea.sflag [#allocation5], 1
    %450 = vsyncpa %s449, 1

</llo_original>
